<compile_context>
chip_gen: v6e
topology: v6e:2x2x1
jax: 0.10.0
libtpu: 0.0.40
codegen_flags: <defaults>
</compile_context>

<pallas_src>
from functools import partial

import numpy as np
import jax
import jax.numpy as jnp
from jax.experimental import pallas as pl
from jax.experimental.pallas import tpu as pltpu


# ----------------------------------------------------------------------------
# Deterministic parameter construction (replaces librosa mel basis / torch hann)
# ----------------------------------------------------------------------------
def librosa_mel_fn(sr, n_fft, n_mels, fmin=0.0, fmax=None):
    """Slaney-style mel filterbank (librosa defaults), pure numpy, deterministic."""
    if fmax is None:
        fmax = sr / 2.0

    def hz_to_mel(f):
        f = np.asarray(f, dtype=np.float64)
        mels = f / (200.0 / 3.0)
        min_log_hz = 1000.0
        min_log_mel = min_log_hz / (200.0 / 3.0)
        logstep = np.log(6.4) / 27.0
        return np.where(f >= min_log_hz,
                        min_log_mel + np.log(np.maximum(f, 1e-10) / min_log_hz) / logstep,
                        mels)

    def mel_to_hz(m):
        m = np.asarray(m, dtype=np.float64)
        freqs = m * (200.0 / 3.0)
        min_log_hz = 1000.0
        min_log_mel = min_log_hz / (200.0 / 3.0)
        logstep = np.log(6.4) / 27.0
        return np.where(m >= min_log_mel,
                        min_log_hz * np.exp(logstep * (m - min_log_mel)),
                        freqs)

    n_freqs = n_fft // 2 + 1
    fftfreqs = np.linspace(0.0, sr / 2.0, n_freqs)
    mel_pts = np.linspace(hz_to_mel(fmin), hz_to_mel(fmax), n_mels + 2)
    hz_pts = mel_to_hz(mel_pts)
    fdiff = np.diff(hz_pts)
    ramps = hz_pts[:, None] - fftfreqs[None, :]
    weights = np.zeros((n_mels, n_freqs), dtype=np.float64)
    for i in range(n_mels):
        lower = -ramps[i] / fdiff[i]
        upper = ramps[i + 2] / fdiff[i + 1]
        weights[i] = np.maximum(0.0, np.minimum(lower, upper))
    enorm = 2.0 / (hz_pts[2:n_mels + 2] - hz_pts[:n_mels])
    weights *= enorm[:, None]
    return weights.astype(np.float32)


def _round_up(x, m):
    return ((x + m - 1) // m) * m


def _choose_tq(T):
    """Frames per grid step (lane dim of the transposed outputs): multiple of 128, as large as
    practical (<=1024), but keep >=2 grid steps whenever there is enough work so the single
    'parallel' axis can shard across TensorCores (megacore / v7x dual-TC)."""
    for tq in (1024, 512, 256, 128):
        if _round_up(T, tq) // tq >= 2:
            return tq
    return 128


# ----------------------------------------------------------------------------
# Kernels: hop-sized waveform segments -> transposed power spectrum (+ mel)
# ----------------------------------------------------------------------------
def _power_tile(seg_ref, w_ref, tq):
    """Windowed power spectrum of one tile of `tq` frames, already transposed to (freq, time).

    seg_ref: (n_seg, hop) f32   -- non-overlapping hop-sized segments of the padded waveform
    w_ref:   (4, hop, n_fft) bf16 packed DFT:
             lanes 0..fh-1    = window*cos  (bins 0..fh-1)
             lane  fh         = window*cos  (Nyquist bin, reuses the identically-zero sin-bin-0 lane)
             lanes fh+1..2fh-1= -window*sin (bins 1..fh-1)
    Returns (p_main (fh, tq): power of bins 0..fh-1, nyq (1, tq): power of the Nyquist bin).
    """
    fh = w_ref.shape[-1] // 2
    base = pl.multiple_of(pl.program_id(0) * tq, 128)
    # hop == n_fft // 4: each frame is 4 consecutive hop-sized segments, so the windowed DFT of tq
    # overlapping frames is 4 row-shifted matmuls over non-overlapping segments (no frames array).
    chunk = seg_ref[pl.ds(base, tq + 16), :]                 # (tq+16, hop) f32, aligned dynamic load
    z = None
    for p in range(4):
        lhs = chunk[p:p + tq, :].astype(jnp.bfloat16)        # row-shifted segment block (tq, hop)
        d = jnp.dot(lhs, w_ref[p], preferred_element_type=jnp.float32)
        z = d if z is None else z + d                        # (tq, 2*fh) f32
    zt = z.T                                                 # (2*fh, tq): XLU transpose (idle slot)
    sq = zt * zt
    cos2 = sq[:fh, :]                                        # Re^2, bins 0..fh-1
    oth2 = sq[fh:, :]                                        # row 0: Re_Nyquist^2 ; rows k>=1: Im_k^2
    row = jax.lax.broadcasted_iota(jnp.int32, (fh, tq), 0)
    p_main = cos2 + jnp.where(row == 0, 0.0, oth2)           # Im_0 == 0 exactly (DC bin fixup)
    return p_main, oth2[0:1, :]


def _tfc_kernel_mel(seg_ref, w_ref, melb_ref, melnyq_ref, mag_ref, mel_ref):
    fh = mag_ref.shape[0] - 1
    tq = mag_ref.shape[1]
    p_main, nyq = _power_tile(seg_ref, w_ref, tq)
    mag_ref[0:fh, :] = p_main                                # lane-dense (128, tq) store
    mag_ref[fh:fh + 1, :] = nyq                              # Nyquist row
    # f32 x f32 matmul: tiny (M x fh x tq), hidden under the HBM-bound schedule; keeps the power
    # spectrum un-requantized.  Nyquist contribution added as a rank-1 VPU broadcast.
    mel_ref[...] = (jnp.dot(melb_ref[...], p_main, preferred_element_type=jnp.float32)
                    + melnyq_ref[...] * nyq)


def _tfc_kernel_mag(seg_ref, w_ref, mag_ref):
    fh = mag_ref.shape[0] - 1
    tq = mag_ref.shape[1]
    p_main, nyq = _power_tile(seg_ref, w_ref, tq)
    mag_ref[0:fh, :] = p_main
    mag_ref[fh:fh + 1, :] = nyq


# ----------------------------------------------------------------------------
# Jitted forward (pad -> segment view -> pallas_call), exact-shape outputs
# ----------------------------------------------------------------------------
@partial(jax.jit, static_argnames=("n_fft", "want_mel"))
def _tfc_forward(audio, dft_w, melb, melnyq, *, n_fft, want_mel):
    hop = n_fft // 4                 # torchaudio.transforms.Spectrogram(hop_length=n_fft // 4)
    fh = n_fft // 2
    n_freqs = fh + 1
    L = audio.shape[-1]
    T = 1 + L // hop
    tq = _choose_tq(T)
    n_blocks = pl.cdiv(T, tq)
    t_cover = n_blocks * tq

    # center=True reflect padding, then a non-overlapping hop-sized segment view; the kernel
    # rebuilds the 75%-overlapping frames on the fly (no 4x-duplicated frames array in HBM).
    x = jnp.pad(audio.astype(jnp.float32), (n_fft // 2, n_fft // 2), mode="reflect")
    n_seg = t_cover + 16             # 16 lookahead rows for the in-kernel +0..+3 segment shifts
    x = jnp.pad(x, (0, n_seg * hop - x.shape[0]))
    seg = x.reshape(n_seg, hop)

    seg_spec = pl.BlockSpec((n_seg, hop), lambda i: (0, 0))          # resident in VMEM, fetched once
    w_spec = pl.BlockSpec(dft_w.shape, lambda i: (0, 0, 0))
    mag_spec = pl.BlockSpec((n_freqs, tq), lambda i: (0, i))
    cp = pltpu.CompilerParams(dimension_semantics=("parallel",))

    if want_mel:
        n_mels = melb.shape[0]
        mag, mel = pl.pallas_call(
            _tfc_kernel_mel,
            out_shape=(jax.ShapeDtypeStruct((n_freqs, T), jnp.float32),
                       jax.ShapeDtypeStruct((n_mels, T), jnp.float32)),
            grid=(n_blocks,),
            in_specs=[seg_spec, w_spec,
                      pl.BlockSpec(melb.shape, lambda i: (0, 0)),
                      pl.BlockSpec(melnyq.shape, lambda i: (0, 0))],
            out_specs=(mag_spec, pl.BlockSpec((n_mels, tq), lambda i: (0, i))),
            compiler_params=cp,
        )(seg, dft_w, melb, melnyq)
        return mag, mel

    mag = pl.pallas_call(
        _tfc_kernel_mag,
        out_shape=jax.ShapeDtypeStruct((n_freqs, T), jnp.float32),
        grid=(n_blocks,),
        in_specs=[seg_spec, w_spec],
        out_specs=mag_spec,
        compiler_params=cp,
    )(seg, dft_w)
    return mag


# ----------------------------------------------------------------------------
# Module wrapper (parity with the torch TimeFreqConverter forward pass)
# ----------------------------------------------------------------------------
class TimeFreqConverter:
    """Pallas/TPU port of the torch TimeFreqConverter forward pass (power spectrogram + mel)."""

    def __init__(self, n_fft=256, hop_length=64, win_length=256, sampling_rate=16000,
                 n_mel_channels=32, mel_fmin=0.0, mel_fmax=None):
        if n_fft % 256 != 0:
            raise ValueError("packed DFT layout requires n_fft % 256 == 0")
        self.n_fft = n_fft
        # Stored for parity only: like the torch module, forward always uses the Spectrogram
        # defaults hop = n_fft // 4 and win_length = n_fft (constructor hop/win are unused).
        self.hop_length = hop_length
        self.win_length = win_length
        self.sampling_rate = sampling_rate
        self.n_mel_channels = n_mel_channels

        hop = n_fft // 4
        fh = n_fft // 2

        mel_np = librosa_mel_fn(sampling_rate, n_fft, n_mel_channels, mel_fmin, mel_fmax)  # (M, fh+1)
        self.mel_basis = jnp.asarray(mel_np)                    # f32, kept for reference checks
        self.melb = jnp.asarray(mel_np[:, :fh])                 # (M, fh) f32  bins 0..fh-1
        self.melnyq = jnp.asarray(mel_np[:, fh:fh + 1])         # (M, 1)  f32  Nyquist-bin weights

        # torch.hann_window(n_fft) (periodic) -- the window torchaudio's Spectrogram actually uses.
        n = np.arange(n_fft, dtype=np.float64)
        window = 0.5 - 0.5 * np.cos(2.0 * np.pi * n / n_fft)
        self.window = jnp.asarray(window.astype(np.float32))    # reference only

        # Packed windowed one-sided DFT:  (x*w) @ [cos | -sin]  ==  x @ [w*cos | -w*sin].
        # sin_0 == sin_Nyquist == 0, so the Nyquist cos column takes the sin-bin-0 lane.
        k = np.arange(fh + 1, dtype=np.float64)
        ang = 2.0 * np.pi * np.outer(n, k) / n_fft               # (n_fft, fh+1)
        wc = window[:, None] * np.cos(ang)
        ws = -window[:, None] * np.sin(ang)
        W = np.zeros((n_fft, 2 * fh), dtype=np.float32)
        W[:, :fh] = wc[:, :fh]                                   # Re weights, bins 0..fh-1
        W[:, fh] = wc[:, fh]                                     # Re weights, Nyquist bin
        W[:, fh + 1:] = ws[:, 1:fh]                              # Im weights, bins 1..fh-1
        # Split into the 4 hop-sized row groups used by the in-kernel overlap framing.
        self.dft_w = jnp.asarray(W.reshape(4, hop, 2 * fh), dtype=jnp.bfloat16)

    def __call__(self, audio, mel=False):
        audio = jnp.asarray(audio)
        if audio.ndim == 2 and audio.shape[0] == 1:
            audio = audio[0]                                     # mimic torch .squeeze() for B == 1
        if audio.ndim != 1:
            raise ValueError("this Pallas port supports 1-D (single-clip) audio")
        if mel:
            return _tfc_forward(audio, self.dft_w, self.melb, self.melnyq,
                                n_fft=self.n_fft, want_mel=True)
        return _tfc_forward(audio, self.dft_w, self.melb, self.melnyq,
                            n_fft=self.n_fft, want_mel=False)


if __name__ == "__main__":
    key = jax.random.PRNGKey(0)
    n_fft, sr, n_mels = 256, 16000, 32
    L = 8000                                # 0.5 s @ 16 kHz -> T = 1 + L // 64 = 126 frames
    audio = jax.random.normal(key, (L,), dtype=jnp.float32)

    conv = TimeFreqConverter(n_fft=n_fft, hop_length=n_fft // 4, win_length=n_fft,
                             sampling_rate=sr, n_mel_channels=n_mels)

    magnitude, mel_out = conv(audio, mel=True)
    mag_only = conv(audio, mel=False)                            # exercises the no-mel kernel too
    magnitude, mel_out, mag_only = jax.block_until_ready((magnitude, mel_out, mag_only))

    hop = n_fft // 4
    T = 1 + L // hop
    F = n_fft // 2 + 1

    # Pure-JAX f32 rFFT reference for correctness.
    padded = jnp.pad(audio, (n_fft // 2, n_fft // 2), mode="reflect")
    idx = jnp.arange(T)[:, None] * hop + jnp.arange(n_fft)[None, :]
    fw = padded[idx] * conv.window[None, :]
    spec = jnp.fft.rfft(fw, n=n_fft, axis=-1)
    mag_ref = np.asarray((jnp.abs(spec) ** 2).T, dtype=np.float32)    # (F, T)
    mel_ref = np.asarray(conv.mel_basis) @ mag_ref                    # (M, T)

    mag_np = np.asarray(magnitude)
    mel_np = np.asarray(mel_out)
    mago_np = np.asarray(mag_only)
    assert mag_np.shape == (F, T), mag_np.shape
    assert mel_np.shape == (n_mels, T), mel_np.shape
    assert mago_np.shape == (F, T), mago_np.shape

    def rel(a, b):
        return float(np.linalg.norm(a - b) / np.linalg.norm(b))

    # bf16 MXU inputs with f32 accumulation: expected relative L2 error ~0.3%.
    assert rel(mag_np, mag_ref) < 3e-2, f"magnitude rel-L2 error too large: {rel(mag_np, mag_ref)}"
    assert rel(mel_np, mel_ref) < 3e-2, f"mel rel-L2 error too large: {rel(mel_np, mel_ref)}"
    assert rel(mago_np, mag_ref) < 3e-2, "mel=False magnitude mismatch"
    # Dedicated DC / Nyquist checks for the packed-RHS fixup (sin-bin-0 lane reuse).
    assert rel(mag_np[0], mag_ref[0]) < 5e-2, "DC bin corrupted by packed-DFT fixup"
    assert rel(mag_np[-1], mag_ref[-1]) < 5e-2, "Nyquist bin corrupted by packed-DFT fixup"

    print("KERNEL_OK")
</pallas_src>

<mosaic_0001>
module attributes {stable_mosaic.version = 11 : i64} {
  func.func @_tfc_kernel_mel(%arg0: i32, %arg1: memref<144x64xf32, #tpu.memory_space<vmem>>, %arg2: memref<4x64x256xbf16, #tpu.memory_space<vmem>>, %arg3: memref<32x128xf32, #tpu.memory_space<vmem>>, %arg4: memref<32x1xf32, #tpu.memory_space<vmem>>, %arg5: memref<129x128xf32, #tpu.memory_space<vmem>>, %arg6: memref<32x128xf32, #tpu.memory_space<vmem>>) attributes {dimension_semantics = [#tpu.dimension_semantics<parallel>], iteration_bounds = array<i64: 1>, scalar_prefetch = 0 : i64, scratch_operands = 0 : i64, tpu.core_type = #tpu.core_type<tc>, window_params = [{pipeline_mode = #tpu.pipeline_mode<synchronous>, transform_indices = @transform_0, window_bounds = array<i64: 144, 64>}, {pipeline_mode = #tpu.pipeline_mode<synchronous>, transform_indices = @transform_1, window_bounds = array<i64: 4, 64, 256>}, {pipeline_mode = #tpu.pipeline_mode<synchronous>, transform_indices = @transform_2, window_bounds = array<i64: 32, 128>}, {pipeline_mode = #tpu.pipeline_mode<synchronous>, transform_indices = @transform_3, window_bounds = array<i64: 32, 1>}, {transform_indices = @transform_4, window_bounds = array<i64: 129, 128>}, {transform_indices = @transform_5, window_bounds = array<i64: 32, 128>}]} {
    %c128_i32 = arith.constant 128 : i32
    %0 = arith.muli %arg0, %c128_i32 : i32
    %1 = tpu.assume_multiple %0, 128 : i32
    %2 = arith.index_cast %1 : i32 to index
    %c0 = arith.constant 0 : index
    %3 = vector.load %arg1[%2, %c0] : memref<144x64xf32, #tpu.memory_space<vmem>>, vector<144x64xf32>
    %4 = vector.extract_strided_slice %3 {offsets = [0, 0], sizes = [128, 64], strides = [1, 1]} : vector<144x64xf32> to vector<128x64xf32>
    %5 = arith.truncf %4 : vector<128x64xf32> to vector<128x64xbf16>
    %c0_0 = arith.constant 0 : index
    %c0_1 = arith.constant 0 : index
    %c0_2 = arith.constant 0 : index
    %6 = vector.load %arg2[%c0_0, %c0_1, %c0_2] : memref<4x64x256xbf16, #tpu.memory_space<vmem>>, vector<1x64x256xbf16>
    %7 = vector.shape_cast %6 : vector<1x64x256xbf16> to vector<64x256xbf16>
    %cst = arith.constant dense<0.000000e+00> : vector<128x256xf32>
    %8 = tpu.matmul %5, %7, %cst {dimension_numbers = #tpu.dot_dimension_numbers<[1], [0], [0], [1], [0, 0, 1, 1], [], []>} : vector<128x64xbf16>, vector<64x256xbf16>, vector<128x256xf32> -> vector<128x256xf32>
    %9 = vector.extract_strided_slice %3 {offsets = [1, 0], sizes = [128, 64], strides = [1, 1]} : vector<144x64xf32> to vector<128x64xf32>
    %10 = arith.truncf %9 : vector<128x64xf32> to vector<128x64xbf16>
    %c1 = arith.constant 1 : index
    %c0_3 = arith.constant 0 : index
    %c0_4 = arith.constant 0 : index
    %11 = vector.load %arg2[%c1, %c0_3, %c0_4] : memref<4x64x256xbf16, #tpu.memory_space<vmem>>, vector<1x64x256xbf16>
    %12 = vector.shape_cast %11 : vector<1x64x256xbf16> to vector<64x256xbf16>
    %cst_5 = arith.constant dense<0.000000e+00> : vector<128x256xf32>
    %13 = tpu.matmul %10, %12, %cst_5 {dimension_numbers = #tpu.dot_dimension_numbers<[1], [0], [0], [1], [0, 0, 1, 1], [], []>} : vector<128x64xbf16>, vector<64x256xbf16>, vector<128x256xf32> -> vector<128x256xf32>
    %14 = arith.addf %8, %13 : vector<128x256xf32>
    %15 = vector.extract_strided_slice %3 {offsets = [2, 0], sizes = [128, 64], strides = [1, 1]} : vector<144x64xf32> to vector<128x64xf32>
    %16 = arith.truncf %15 : vector<128x64xf32> to vector<128x64xbf16>
    %c2 = arith.constant 2 : index
    %c0_6 = arith.constant 0 : index
    %c0_7 = arith.constant 0 : index
    %17 = vector.load %arg2[%c2, %c0_6, %c0_7] : memref<4x64x256xbf16, #tpu.memory_space<vmem>>, vector<1x64x256xbf16>
    %18 = vector.shape_cast %17 : vector<1x64x256xbf16> to vector<64x256xbf16>
    %cst_8 = arith.constant dense<0.000000e+00> : vector<128x256xf32>
    %19 = tpu.matmul %16, %18, %cst_8 {dimension_numbers = #tpu.dot_dimension_numbers<[1], [0], [0], [1], [0, 0, 1, 1], [], []>} : vector<128x64xbf16>, vector<64x256xbf16>, vector<128x256xf32> -> vector<128x256xf32>
    %20 = arith.addf %14, %19 : vector<128x256xf32>
    %21 = vector.extract_strided_slice %3 {offsets = [3, 0], sizes = [128, 64], strides = [1, 1]} : vector<144x64xf32> to vector<128x64xf32>
    %22 = arith.truncf %21 : vector<128x64xf32> to vector<128x64xbf16>
    %c3 = arith.constant 3 : index
    %c0_9 = arith.constant 0 : index
    %c0_10 = arith.constant 0 : index
    %23 = vector.load %arg2[%c3, %c0_9, %c0_10] : memref<4x64x256xbf16, #tpu.memory_space<vmem>>, vector<1x64x256xbf16>
    %24 = vector.shape_cast %23 : vector<1x64x256xbf16> to vector<64x256xbf16>
    %cst_11 = arith.constant dense<0.000000e+00> : vector<128x256xf32>
    %25 = tpu.matmul %22, %24, %cst_11 {dimension_numbers = #tpu.dot_dimension_numbers<[1], [0], [0], [1], [0, 0, 1, 1], [], []>} : vector<128x64xbf16>, vector<64x256xbf16>, vector<128x256xf32> -> vector<128x256xf32>
    %26 = arith.addf %20, %25 : vector<128x256xf32>
    %27 = tpu.transpose %26, [1, 0] : vector<128x256xf32> -> vector<256x128xf32>
    %28 = arith.mulf %27, %27 : vector<256x128xf32>
    %29 = vector.extract_strided_slice %28 {offsets = [0, 0], sizes = [128, 128], strides = [1, 1]} : vector<256x128xf32> to vector<128x128xf32>
    %30 = vector.extract_strided_slice %28 {offsets = [128, 0], sizes = [128, 128], strides = [1, 1]} : vector<256x128xf32> to vector<128x128xf32>
    %31 = tpu.iota {dimensions = array<i32: 0>} : vector<128x128xi32>
    %c0_i32 = arith.constant 0 : i32
    %32 = vector.broadcast %c0_i32 : i32 to vector<128x128xi32>
    %33 = arith.cmpi eq, %31, %32 : vector<128x128xi32>
    %cst_12 = arith.constant 0.000000e+00 : f32
    %34 = vector.broadcast %cst_12 : f32 to vector<128x128xf32>
    %35 = arith.select %33, %34, %30 : vector<128x128xi1>, vector<128x128xf32>
    %36 = arith.addf %29, %35 : vector<128x128xf32>
    %37 = vector.extract_strided_slice %30 {offsets = [0, 0], sizes = [1, 128], strides = [1, 1]} : vector<128x128xf32> to vector<1x128xf32>
    %c0_13 = arith.constant 0 : index
    %c0_14 = arith.constant 0 : index
    %38 = vector.load %arg5[%c0_13, %c0_14] : memref<129x128xf32, #tpu.memory_space<vmem>>, vector<128x128xf32>
    tpu.vector_store %arg5[%c0_13, %c0_14], %36 {strides = array<i32>} : memref<129x128xf32, #tpu.memory_space<vmem>>, vector<128x128xf32>,
    %c128 = arith.constant 128 : index
    %c0_15 = arith.constant 0 : index
    %39 = vector.load %arg5[%c128, %c0_15] : memref<129x128xf32, #tpu.memory_space<vmem>>, vector<1x128xf32>
    tpu.vector_store %arg5[%c128, %c0_15], %37 {strides = array<i32>} : memref<129x128xf32, #tpu.memory_space<vmem>>, vector<1x128xf32>,
    %c0_16 = arith.constant 0 : index
    %c0_17 = arith.constant 0 : index
    %40 = vector.load %arg3[%c0_16, %c0_17] : memref<32x128xf32, #tpu.memory_space<vmem>>, vector<32x128xf32>
    %cst_18 = arith.constant dense<0.000000e+00> : vector<32x128xf32>
    %41 = tpu.matmul %40, %36, %cst_18 {dimension_numbers = #tpu.dot_dimension_numbers<[1], [0], [0], [1], [0, 0, 1, 1], [], []>} : vector<32x128xf32>, vector<128x128xf32>, vector<32x128xf32> -> vector<32x128xf32>
    %c0_19 = arith.constant 0 : index
    %c0_20 = arith.constant 0 : index
    %42 = vector.load %arg4[%c0_19, %c0_20] : memref<32x1xf32, #tpu.memory_space<vmem>>, vector<32x1xf32>
    %43 = vector.broadcast %42 : vector<32x1xf32> to vector<32x128xf32>
    %44 = vector.broadcast %37 : vector<1x128xf32> to vector<32x128xf32>
    %45 = arith.mulf %43, %44 : vector<32x128xf32>
    %46 = arith.addf %41, %45 : vector<32x128xf32>
    %c0_21 = arith.constant 0 : index
    %c0_22 = arith.constant 0 : index
    %47 = vector.load %arg6[%c0_21, %c0_22] : memref<32x128xf32, #tpu.memory_space<vmem>>, vector<32x128xf32>
    tpu.vector_store %arg6[%c0_21, %c0_22], %46 {strides = array<i32>} : memref<32x128xf32, #tpu.memory_space<vmem>>, vector<32x128xf32>,
    return
  }
  func.func @transform_0(%arg0: i32) -> (i32, i32) {
    %c0_i32 = arith.constant 0 : i32
    %c0_i32_0 = arith.constant 0 : i32
    %c0_i32_1 = arith.constant 0 : i32
    return %c0_i32, %c0_i32_0 : i32, i32
  }
  func.func @transform_1(%arg0: i32) -> (i32, i32, i32) {
    %c0_i32 = arith.constant 0 : i32
    %c0_i32_0 = arith.constant 0 : i32
    %c0_i32_1 = arith.constant 0 : i32
    %c0_i32_2 = arith.constant 0 : i32
    return %c0_i32, %c0_i32_0, %c0_i32_1 : i32, i32, i32
  }
  func.func @transform_2(%arg0: i32) -> (i32, i32) {
    %c0_i32 = arith.constant 0 : i32
    %c0_i32_0 = arith.constant 0 : i32
    %c0_i32_1 = arith.constant 0 : i32
    return %c0_i32, %c0_i32_0 : i32, i32
  }
  func.func @transform_3(%arg0: i32) -> (i32, i32) {
    %c0_i32 = arith.constant 0 : i32
    %c0_i32_0 = arith.constant 0 : i32
    %c0_i32_1 = arith.constant 0 : i32
    return %c0_i32, %c0_i32_0 : i32, i32
  }
  func.func @transform_4(%arg0: i32) -> (i32, i32) {
    %c0_i32 = arith.constant 0 : i32
    %c0_i32_0 = arith.constant 0 : i32
    return %c0_i32, %arg0 : i32, i32
  }
  func.func @transform_5(%arg0: i32) -> (i32, i32) {
    %c0_i32 = arith.constant 0 : i32
    %c0_i32_0 = arith.constant 0 : i32
    return %c0_i32, %arg0 : i32, i32
  }
}

</mosaic_0001>

<llo_original>
// kernel: _tfc_forward.1
$region0: #{_tfc_forward.1}
  #allocation0 [shape = 'u32[]', space=smem, size = 0x4, offset = 0x4, fixed_abs, tag = 'smem constant byte address 0x4 - core index']
  #allocation1 [shape = 'u32[144,128]{1,0:T(1,128)}', space=vmem, size = 0x12000, scoped, tag = 'internal scratch']
  %s0 = inlined_call_operand.vmem [shape: f32[144,64], index: 0, kind: input, shape index: {}]
  %s1 = inlined_call_operand.vmem [shape: bf16[4,64,256], index: 1, kind: input, shape index: {}]
  %s2 = inlined_call_operand.vmem [shape: f32[32,128], index: 2, kind: input, shape index: {}]
  %s3 = inlined_call_operand.vmem [shape: f32[32,1], index: 3, kind: input, shape index: {}]
  %s4 = inlined_call_operand.hbm [shape: f32[129,126], index: 4, kind: output, shape index: {0}]
  %s5 = inlined_call_operand.hbm [shape: f32[32,126], index: 5, kind: output, shape index: {1}]
  %6 = xla_tuple %s4, %s5
  %s7 = sld [smem:[#allocation0]]
  $region34: #{_tfc_forward.1} parent=0
    _
  %s9 = ssub.s32 1, %s7
  %s10 = scalar_select 0, %s9, %s7
  $region1: #{_tfc_forward.1} parent=0
    #allocation2 [shape = 'u8[69632]{0}', space=vmem, size = 0x11000, scoped, tag = 'output window, operand 0, single buffered']
    #allocation3 [shape = 's32[1]{0}', space=sflag, size = 0x4, scoped, tag = 'scoped memory for _tfc_forward.1']
    #allocation4 [shape = 'u8[16384]{0}', space=vmem, size = 0x4000, scoped, tag = 'output window, operand 1, single buffered']
    #allocation5 [shape = 's32[1]{0}', space=sflag, size = 0x4, scoped, tag = 'scoped memory for _tfc_forward.1']
    %11 = vsyncpa [#allocation3], 0
    %12 = vsyncpa [#allocation5], 0
    // Predicated region
    $region2: #{_tfc_forward.1} parent=1 // pred_check
      _
    $region3: #{_tfc_forward.1} parent=1 // pred_check_branch
      %14 = sbr.rel (0) target = $region5
    $region4: #{_tfc_forward.1} parent=1 // pred_region
      _
    $region5: #{_tfc_forward.1} parent=1 // pred_fallthru
      _
    // Predicated region
    $region6: #{_tfc_forward.1} parent=1 // pred_check
      _
    $region7: #{_tfc_forward.1} parent=1 // pred_check_branch
      %16 = sbr.rel (0) target = $region9
    $region8: #{_tfc_forward.1} parent=1 // pred_region
      _
    $region9: #{_tfc_forward.1} parent=1 // pred_fallthru
      _
    // Predicated region
    $region10: #{_tfc_forward.1} parent=1 // pred_check
      _
    $region11: #{_tfc_forward.1} parent=1 // pred_check_branch
      %18 = sbr.rel (0) target = $region13
    $region12: #{_tfc_forward.1} parent=1 // pred_region
      _
    $region13: #{_tfc_forward.1} parent=1 // pred_fallthru
      _
    // Predicated region
    $region14: #{_tfc_forward.1} parent=1 // pred_check
      _
    $region15: #{_tfc_forward.1} parent=1 // pred_check_branch
      %20 = sbr.rel (0) target = $region17
    $region16: #{_tfc_forward.1} parent=1 // pred_region
      _
    $region17: #{_tfc_forward.1} parent=1 // pred_fallthru
      _
    %s22 = smul.u32 0, 128
    %s23 = scalar_lea.vmem %s0, %s22
    %v24 = vld [vmem:[%s23] sm:$0xff]
    %v25 = vld [vmem:[%s23 + $0x8] sm:$0xff]
    %v26 = vld [vmem:[%s23 + $0x10] sm:$0xff]
    %v27 = vld [vmem:[%s23 + $0x18] sm:$0xff]
    %v28 = vld [vmem:[%s23 + $0x20] sm:$0xff]
    %v29 = vld [vmem:[%s23 + $0x28] sm:$0xff]
    %v30 = vld [vmem:[%s23 + $0x30] sm:$0xff]
    %v31 = vld [vmem:[%s23 + $0x38] sm:$0xff]
    %v32 = vld [vmem:[%s23 + $0x40] sm:$0xff]
    %v33 = vld [vmem:[%s23 + $0x48] sm:$0xff]
    %v34 = vld [vmem:[%s23 + $0x50] sm:$0xff]
    %v35 = vld [vmem:[%s23 + $0x58] sm:$0xff]
    %v36 = vld [vmem:[%s23 + $0x60] sm:$0xff]
    %v37 = vld [vmem:[%s23 + $0x68] sm:$0xff]
    %v38 = vld [vmem:[%s23 + $0x70] sm:$0xff]
    %v39 = vld [vmem:[%s23 + $0x78] sm:$0xff]
    %v40 = vld [vmem:[%s23 + $0x80] sm:$0xff]
    %v41 = vpack.c.bf16 %v25, %v24
    %v42 = vpack.c.bf16 %v27, %v26
    %v43 = vpack.c.bf16 %v29, %v28
    %v44 = vpack.c.bf16 %v31, %v30
    %v45 = vpack.c.bf16 %v33, %v32
    %v46 = vpack.c.bf16 %v35, %v34
    %v47 = vpack.c.bf16 %v37, %v36
    %v48 = vpack.c.bf16 %v39, %v38
    %v49 = vld [vmem:[%s1] sm:$0xff]
    %v50 = vld [vmem:[%s1 + $0x8] sm:$0xff]
    %v51 = vld [vmem:[%s1 + $0x10] sm:$0xff]
    %v52 = vld [vmem:[%s1 + $0x18] sm:$0xff]
    %v53 = vld [vmem:[%s1 + $0x20] sm:$0xff]
    %v54 = vld [vmem:[%s1 + $0x28] sm:$0xff]
    %v55 = vld [vmem:[%s1 + $0x30] sm:$0xff]
    %v56 = vld [vmem:[%s1 + $0x38] sm:$0xff]
    %v57 = vpack.c.bf16 %v40, %v40
    %s58 = scalar_lea.vmem %s1, 64
    %v59 = vld [vmem:[%s58] sm:$0xff]
    %v60 = vld [vmem:[%s58 + $0x8] sm:$0xff]
    %v61 = vld [vmem:[%s58 + $0x10] sm:$0xff]
    %v62 = vld [vmem:[%s58 + $0x18] sm:$0xff]
    %v63 = vld [vmem:[%s58 + $0x20] sm:$0xff]
    %v64 = vld [vmem:[%s58 + $0x28] sm:$0xff]
    %v65 = vld [vmem:[%s58 + $0x30] sm:$0xff]
    %v66 = vld [vmem:[%s58 + $0x38] sm:$0xff]
    %vm67 = vsmask.f32 7424
    %v69 = vshrl.u32 %v41, 16
    %v71 = vshll.u32 %v41, 16
    %v73 = vrot.slane %v71, 1
    %v74 = vor.u32 %v69, %v73
    %v76 = vshll.u32 %v42, 16
    %v78 = vrot.slane %v76, 1
    %v79 = vsel %vm67, %v74, %v78
    %v80 = vshrl.u32 %v42, 16
    %v82 = vor.u32 %v80, %v78
    %v84 = vshll.u32 %v43, 16
    %v86 = vrot.slane %v84, 1
    %v87 = vsel %vm67, %v82, %v86
    %v88 = vshrl.u32 %v43, 16
    %v90 = vor.u32 %v88, %v86
    %v92 = vshll.u32 %v44, 16
    %v94 = vrot.slane %v92, 1
    %v95 = vsel %vm67, %v90, %v94
    %v96 = vshrl.u32 %v44, 16
    %v98 = vor.u32 %v96, %v94
    %v100 = vshll.u32 %v45, 16
    %v102 = vrot.slane %v100, 1
    %v103 = vsel %vm67, %v98, %v102
    %v104 = vshrl.u32 %v45, 16
    %v106 = vor.u32 %v104, %v102
    %v108 = vshll.u32 %v46, 16
    %v110 = vrot.slane %v108, 1
    %v111 = vsel %vm67, %v106, %v110
    %v112 = vshrl.u32 %v46, 16
    %v114 = vor.u32 %v112, %v110
    %v116 = vshll.u32 %v47, 16
    %v118 = vrot.slane %v116, 1
    %v119 = vsel %vm67, %v114, %v118
    %v120 = vshrl.u32 %v47, 16
    %v122 = vor.u32 %v120, %v118
    %v124 = vshll.u32 %v48, 16
    %v126 = vrot.slane %v124, 1
    %v127 = vsel %vm67, %v122, %v126
    %v128 = vshrl.u32 %v48, 16
    %v130 = vor.u32 %v128, %v126
    %v132 = vshll.u32 %v57, 16
    %v134 = vrot.slane %v132, 1
    %v135 = vsel %vm67, %v130, %v134
    %v144 = vunpack.c.l.b16 %v59
    %v145 = vunpack.c.h.b16 %v59
    %v146 = vunpack.c.l.b16 %v60
    %v147 = vunpack.c.h.b16 %v60
    %v148 = vunpack.c.l.b16 %v61
    %v149 = vunpack.c.h.b16 %v61
    %v150 = vunpack.c.l.b16 %v62
    %v151 = vunpack.c.h.b16 %v62
    %v152 = vunpack.c.l.b16 %v63
    %v153 = vunpack.c.h.b16 %v63
    %v154 = vunpack.c.l.b16 %v64
    %v155 = vunpack.c.h.b16 %v64
    %v156 = vunpack.c.l.b16 %v65
    %v157 = vunpack.c.h.b16 %v65
    %v158 = vunpack.c.l.b16 %v66
    %v159 = vunpack.c.h.b16 %v66
    %v160 = vpack.c.b16 %v146, %v144
    %v161 = vpack.c.b16 %v147, %v145
    %v162 = vpack.c.b16 %v150, %v148
    %v163 = vpack.c.b16 %v151, %v149
    %v164 = vpack.c.b16 %v154, %v152
    %v165 = vpack.c.b16 %v155, %v153
    %v166 = vpack.c.b16 %v158, %v156
    %v167 = vpack.c.b16 %v159, %v157
    %vm176 = vcmask 523264
    %v178 = vsel %vm176, %v79, 0
    %v181 = vsel %vm176, %v87, 0
    %v184 = vsel %vm176, %v95, 0
    %v187 = vsel %vm176, %v103, 0
    %v190 = vsel %vm176, %v111, 0
    %v193 = vsel %vm176, %v119, 0
    %v196 = vsel %vm176, %v127, 0
    %v199 = vsel %vm176, %v135, 0
    %201 = vmatprep.subr.bf16.mxu0 0
    %202 = vmatpush1.bf16.msra.mxu0 0
    %203 = vmatprep.subr.bf16.mxu0 0
    %204 = vmatpush1.bf16.msra.mxu0 0
    %205 = vmatprep.subr.bf16.mxu0 0
    %206 = vmatpush1.bf16.msra.mxu0 0
    %207 = vmatprep.subr.bf16.mxu0 0
    %208 = vmatpush1.bf16.msra.mxu0 0
    %209 = vmatprep.subr.bf16.mxu0 %v167
    %210 = vmatpush1.bf16.msra.mxu0 %v166
    %211 = vmatprep.subr.bf16.mxu0 %v165
    %212 = vmatpush1.bf16.msra.mxu0 %v164
    %213 = vmatprep.subr.bf16.mxu0 %v163
    %214 = vmatpush1.bf16.msra.mxu0 %v162
    %215 = vmatprep.subr.bf16.mxu0 %v161
    %216 = vmatpush1.bf16.msra.mxu0 %v160
    %217 = vmatprep.subr.bf16.mxu0 0
    %218 = vmatpush2.bf16.msra.mxu0 0
    %219 = vmatprep.subr.bf16.mxu0 0
    %220 = vmatpush2.bf16.msra.mxu0 0
    %221 = vmatprep.subr.bf16.mxu0 0
    %222 = vmatpush2.bf16.msra.mxu0 0
    %223 = vmatprep.subr.bf16.mxu0 0
    %224 = vmatpush2.bf16.msra.mxu0 0
    %225 = vmatprep.subr.bf16.mxu0 0
    %226 = vmatpush2.bf16.msra.mxu0 0
    %227 = vmatprep.subr.bf16.mxu0 0
    %228 = vmatpush2.bf16.msra.mxu0 0
    %229 = vmatprep.subr.bf16.mxu0 0
    %230 = vmatpush2.bf16.msra.mxu0 0
    %231 = vmatprep.subr.bf16.mxu0 0
    %232 = vmatpush2.bf16.msra.mxu0 0
    %233 = vmatprep.mubr.bf16.mxu0 0
    %234 = vmatmul.mubr.bf16.gmra.mxu0 %v178
    %v235 = vpop.f32.mrf.mxu0
    %v236 = vadd.f32 0.0, %v235
    %v237 = vpop.f32.mrf.mxu0
    %v238 = vadd.f32 0.0, %v237
    %v239 = vpop.f32.mrf.mxu0
    %v240 = vadd.f32 0.0, %v239
    %v241 = vpop.f32.mrf.mxu0
    %v242 = vadd.f32 0.0, %v241
    %243 = vmatprep.mubr.bf16.mxu0 0
    %244 = vmatmul.mubr.bf16.gmra.mxu0 %v181
    %v245 = vpop.f32.mrf.mxu0
    %v246 = vadd.f32 0.0, %v245
    %v247 = vpop.f32.mrf.mxu0
    %v248 = vadd.f32 0.0, %v247
    %v249 = vpop.f32.mrf.mxu0
    %v250 = vadd.f32 0.0, %v249
    %v251 = vpop.f32.mrf.mxu0
    %v252 = vadd.f32 0.0, %v251
    %253 = vmatprep.mubr.bf16.mxu0 0
    %254 = vmatmul.mubr.bf16.gmra.mxu0 %v184
    %v255 = vpop.f32.mrf.mxu0
    %v256 = vadd.f32 0.0, %v255
    %v257 = vpop.f32.mrf.mxu0
    %v258 = vadd.f32 0.0, %v257
    %v259 = vpop.f32.mrf.mxu0
    %v260 = vadd.f32 0.0, %v259
    %v261 = vpop.f32.mrf.mxu0
    %v262 = vadd.f32 0.0, %v261
    %263 = vmatprep.mubr.bf16.mxu0 0
    %264 = vmatmul.mubr.bf16.gmra.mxu0 %v187
    %v265 = vpop.f32.mrf.mxu0
    %v266 = vadd.f32 0.0, %v265
    %v267 = vpop.f32.mrf.mxu0
    %v268 = vadd.f32 0.0, %v267
    %v269 = vpop.f32.mrf.mxu0
    %v270 = vadd.f32 0.0, %v269
    %v271 = vpop.f32.mrf.mxu0
    %v272 = vadd.f32 0.0, %v271
    %273 = vmatprep.mubr.bf16.mxu0 0
    %274 = vmatmul.mubr.bf16.gmra.mxu0 %v190
    %v275 = vpop.f32.mrf.mxu0
    %v276 = vadd.f32 0.0, %v275
    %v277 = vpop.f32.mrf.mxu0
    %v278 = vadd.f32 0.0, %v277
    %v279 = vpop.f32.mrf.mxu0
    %v280 = vadd.f32 0.0, %v279
    %v281 = vpop.f32.mrf.mxu0
    %v282 = vadd.f32 0.0, %v281
    %283 = vmatprep.mubr.bf16.mxu0 0
    %284 = vmatmul.mubr.bf16.gmra.mxu0 %v193
    %v285 = vpop.f32.mrf.mxu0
    %v286 = vadd.f32 0.0, %v285
    %v287 = vpop.f32.mrf.mxu0
    %v288 = vadd.f32 0.0, %v287
    %v289 = vpop.f32.mrf.mxu0
    %v290 = vadd.f32 0.0, %v289
    %v291 = vpop.f32.mrf.mxu0
    %v292 = vadd.f32 0.0, %v291
    %293 = vmatprep.mubr.bf16.mxu0 0
    %294 = vmatmul.mubr.bf16.gmra.mxu0 %v196
    %v295 = vpop.f32.mrf.mxu0
    %v296 = vadd.f32 0.0, %v295
    %v297 = vpop.f32.mrf.mxu0
    %v298 = vadd.f32 0.0, %v297
    %v299 = vpop.f32.mrf.mxu0
    %v300 = vadd.f32 0.0, %v299
    %v301 = vpop.f32.mrf.mxu0
    %v302 = vadd.f32 0.0, %v301
    %303 = vmatprep.mubr.bf16.mxu0 0
    %304 = vmatmul.mubr.bf16.gmra.mxu0 %v199
    %v305 = vpop.f32.mrf.mxu0
    %v306 = vadd.f32 0.0, %v305
    %v307 = vpop.f32.mrf.mxu0
    %v308 = vadd.f32 0.0, %v307
    %v309 = vpop.f32.mrf.mxu0
    %v310 = vadd.f32 0.0, %v309
    %v311 = vpop.f32.mrf.mxu0
    %v312 = vadd.f32 0.0, %v311
    %313 = vdwg.mxu0
    %v322 = vunpack.c.l.b16 %v49
    %v323 = vunpack.c.h.b16 %v49
    %v324 = vunpack.c.l.b16 %v50
    %v325 = vunpack.c.h.b16 %v50
    %v326 = vunpack.c.l.b16 %v51
    %v327 = vunpack.c.h.b16 %v51
    %v328 = vunpack.c.l.b16 %v52
    %v329 = vunpack.c.h.b16 %v52
    %v330 = vunpack.c.l.b16 %v53
    %v331 = vunpack.c.h.b16 %v53
    %v332 = vunpack.c.l.b16 %v54
    %v333 = vunpack.c.h.b16 %v54
    %v334 = vunpack.c.l.b16 %v55
    %v335 = vunpack.c.h.b16 %v55
    %v336 = vunpack.c.l.b16 %v56
    %v337 = vunpack.c.h.b16 %v56
    %v338 = vpack.c.b16 %v324, %v322
    %v339 = vpack.c.b16 %v325, %v323
    %v340 = vpack.c.b16 %v328, %v326
    %v341 = vpack.c.b16 %v329, %v327
    %v342 = vpack.c.b16 %v332, %v330
    %v343 = vpack.c.b16 %v333, %v331
    %v344 = vpack.c.b16 %v336, %v334
    %v345 = vpack.c.b16 %v337, %v335
    %v354 = vsel %vm176, %v41, 0
    %v356 = vsel %vm176, %v42, 0
    %v358 = vsel %vm176, %v43, 0
    %v360 = vsel %vm176, %v44, 0
    %v362 = vsel %vm176, %v45, 0
    %v364 = vsel %vm176, %v46, 0
    %v366 = vsel %vm176, %v47, 0
    %v368 = vsel %vm176, %v48, 0
    %370 = vmatprep.subr.bf16.mxu0 0
    %371 = vmatpush1.bf16.msra.mxu0 0
    %372 = vmatprep.subr.bf16.mxu0 0
    %373 = vmatpush1.bf16.msra.mxu0 0
    %374 = vmatprep.subr.bf16.mxu0 0
    %375 = vmatpush1.bf16.msra.mxu0 0
    %376 = vmatprep.subr.bf16.mxu0 0
    %377 = vmatpush1.bf16.msra.mxu0 0
    %378 = vmatprep.subr.bf16.mxu0 %v345
    %379 = vmatpush1.bf16.msra.mxu0 %v344
    %380 = vmatprep.subr.bf16.mxu0 %v343
    %381 = vmatpush1.bf16.msra.mxu0 %v342
    %382 = vmatprep.subr.bf16.mxu0 %v341
    %383 = vmatpush1.bf16.msra.mxu0 %v340
    %384 = vmatprep.subr.bf16.mxu0 %v339
    %385 = vmatpush1.bf16.msra.mxu0 %v338
    %386 = vmatprep.subr.bf16.mxu0 0
    %387 = vmatpush2.bf16.msra.mxu0 0
    %388 = vmatprep.subr.bf16.mxu0 0
    %389 = vmatpush2.bf16.msra.mxu0 0
    %390 = vmatprep.subr.bf16.mxu0 0
    %391 = vmatpush2.bf16.msra.mxu0 0
    %392 = vmatprep.subr.bf16.mxu0 0
    %393 = vmatpush2.bf16.msra.mxu0 0
    %394 = vmatprep.subr.bf16.mxu0 0
    %395 = vmatpush2.bf16.msra.mxu0 0
    %396 = vmatprep.subr.bf16.mxu0 0
    %397 = vmatpush2.bf16.msra.mxu0 0
    %398 = vmatprep.subr.bf16.mxu0 0
    %399 = vmatpush2.bf16.msra.mxu0 0
    %400 = vmatprep.subr.bf16.mxu0 0
    %401 = vmatpush2.bf16.msra.mxu0 0
    %402 = vmatprep.mubr.bf16.mxu0 0
    %403 = vmatmul.mubr.bf16.gmra.mxu0 %v354
    %v404 = vpop.f32.mrf.mxu0
    %v405 = vadd.f32 %v236, %v404
    %v406 = vpop.f32.mrf.mxu0
    %v407 = vadd.f32 %v238, %v406
    %v408 = vpop.f32.mrf.mxu0
    %v409 = vadd.f32 %v240, %v408
    %v410 = vpop.f32.mrf.mxu0
    %v411 = vadd.f32 %v242, %v410
    %412 = vmatprep.mubr.bf16.mxu0 0
    %413 = vmatmul.mubr.bf16.gmra.mxu0 %v356
    %v414 = vpop.f32.mrf.mxu0
    %v415 = vadd.f32 %v246, %v414
    %v416 = vpop.f32.mrf.mxu0
    %v417 = vadd.f32 %v248, %v416
    %v418 = vpop.f32.mrf.mxu0
    %v419 = vadd.f32 %v250, %v418
    %v420 = vpop.f32.mrf.mxu0
    %v421 = vadd.f32 %v252, %v420
    %422 = vmatprep.mubr.bf16.mxu0 0
    %423 = vmatmul.mubr.bf16.gmra.mxu0 %v358
    %v424 = vpop.f32.mrf.mxu0
    %v425 = vadd.f32 %v256, %v424
    %v426 = vpop.f32.mrf.mxu0
    %v427 = vadd.f32 %v258, %v426
    %v428 = vpop.f32.mrf.mxu0
    %v429 = vadd.f32 %v260, %v428
    %v430 = vpop.f32.mrf.mxu0
    %v431 = vadd.f32 %v262, %v430
    %432 = vmatprep.mubr.bf16.mxu0 0
    %433 = vmatmul.mubr.bf16.gmra.mxu0 %v360
    %v434 = vpop.f32.mrf.mxu0
    %v435 = vadd.f32 %v266, %v434
    %v436 = vpop.f32.mrf.mxu0
    %v437 = vadd.f32 %v268, %v436
    %v438 = vpop.f32.mrf.mxu0
    %v439 = vadd.f32 %v270, %v438
    %v440 = vpop.f32.mrf.mxu0
    %v441 = vadd.f32 %v272, %v440
    %442 = vmatprep.mubr.bf16.mxu0 0
    %443 = vmatmul.mubr.bf16.gmra.mxu0 %v362
    %v444 = vpop.f32.mrf.mxu0
    %v445 = vadd.f32 %v276, %v444
    %v446 = vpop.f32.mrf.mxu0
    %v447 = vadd.f32 %v278, %v446
    %v448 = vpop.f32.mrf.mxu0
    %v449 = vadd.f32 %v280, %v448
    %v450 = vpop.f32.mrf.mxu0
    %v451 = vadd.f32 %v282, %v450
    %452 = vmatprep.mubr.bf16.mxu0 0
    %453 = vmatmul.mubr.bf16.gmra.mxu0 %v364
    %v454 = vpop.f32.mrf.mxu0
    %v455 = vadd.f32 %v286, %v454
    %v456 = vpop.f32.mrf.mxu0
    %v457 = vadd.f32 %v288, %v456
    %v458 = vpop.f32.mrf.mxu0
    %v459 = vadd.f32 %v290, %v458
    %v460 = vpop.f32.mrf.mxu0
    %v461 = vadd.f32 %v292, %v460
    %462 = vmatprep.mubr.bf16.mxu0 0
    %463 = vmatmul.mubr.bf16.gmra.mxu0 %v366
    %v464 = vpop.f32.mrf.mxu0
    %v465 = vadd.f32 %v296, %v464
    %v466 = vpop.f32.mrf.mxu0
    %v467 = vadd.f32 %v298, %v466
    %v468 = vpop.f32.mrf.mxu0
    %v469 = vadd.f32 %v300, %v468
    %v470 = vpop.f32.mrf.mxu0
    %v471 = vadd.f32 %v302, %v470
    %472 = vmatprep.mubr.bf16.mxu0 0
    %473 = vmatmul.mubr.bf16.gmra.mxu0 %v368
    %v474 = vpop.f32.mrf.mxu0
    %v475 = vadd.f32 %v306, %v474
    %v476 = vpop.f32.mrf.mxu0
    %v477 = vadd.f32 %v308, %v476
    %v478 = vpop.f32.mrf.mxu0
    %v479 = vadd.f32 %v310, %v478
    %v480 = vpop.f32.mrf.mxu0
    %v481 = vadd.f32 %v312, %v480
    %482 = vdwg.mxu0
    %s483 = scalar_lea.vmem %s1, 128
    %v484 = vld [vmem:[%s483] sm:$0xff]
    %v485 = vld [vmem:[%s483 + $0x8] sm:$0xff]
    %v486 = vld [vmem:[%s483 + $0x10] sm:$0xff]
    %v487 = vld [vmem:[%s483 + $0x18] sm:$0xff]
    %v488 = vld [vmem:[%s483 + $0x20] sm:$0xff]
    %v489 = vld [vmem:[%s483 + $0x28] sm:$0xff]
    %v490 = vld [vmem:[%s483 + $0x30] sm:$0xff]
    %v491 = vld [vmem:[%s483 + $0x38] sm:$0xff]
    %vm501 = vcmask 1046528
    %v502 = vrot.slane %v41, 1
    %v503 = vrot.slane %v42, 1
    %v504 = vsel %vm501, %v502, %v503
    %v505 = vrot.slane %v43, 1
    %v506 = vsel %vm501, %v503, %v505
    %v507 = vrot.slane %v44, 1
    %v508 = vsel %vm501, %v505, %v507
    %v509 = vrot.slane %v45, 1
    %v510 = vsel %vm501, %v507, %v509
    %v511 = vrot.slane %v46, 1
    %v512 = vsel %vm501, %v509, %v511
    %v513 = vrot.slane %v47, 1
    %v514 = vsel %vm501, %v511, %v513
    %v515 = vrot.slane %v48, 1
    %v516 = vsel %vm501, %v513, %v515
    %v517 = vrot.slane %v57, 1
    %v518 = vsel %vm501, %v515, %v517
    %v527 = vunpack.c.l.b16 %v484
    %v528 = vunpack.c.h.b16 %v484
    %v529 = vunpack.c.l.b16 %v485
    %v530 = vunpack.c.h.b16 %v485
    %v531 = vunpack.c.l.b16 %v486
    %v532 = vunpack.c.h.b16 %v486
    %v533 = vunpack.c.l.b16 %v487
    %v534 = vunpack.c.h.b16 %v487
    %v535 = vunpack.c.l.b16 %v488
    %v536 = vunpack.c.h.b16 %v488
    %v537 = vunpack.c.l.b16 %v489
    %v538 = vunpack.c.h.b16 %v489
    %v539 = vunpack.c.l.b16 %v490
    %v540 = vunpack.c.h.b16 %v490
    %v541 = vunpack.c.l.b16 %v491
    %v542 = vunpack.c.h.b16 %v491
    %v543 = vpack.c.b16 %v529, %v527
    %v544 = vpack.c.b16 %v530, %v528
    %v545 = vpack.c.b16 %v533, %v531
    %v546 = vpack.c.b16 %v534, %v532
    %v547 = vpack.c.b16 %v537, %v535
    %v548 = vpack.c.b16 %v538, %v536
    %v549 = vpack.c.b16 %v541, %v539
    %v550 = vpack.c.b16 %v542, %v540
    %v560 = vsel %vm176, %v504, 0
    %v563 = vsel %vm176, %v506, 0
    %v566 = vsel %vm176, %v508, 0
    %v569 = vsel %vm176, %v510, 0
    %v572 = vsel %vm176, %v512, 0
    %v575 = vsel %vm176, %v514, 0
    %v578 = vsel %vm176, %v516, 0
    %v581 = vsel %vm176, %v518, 0
    %583 = vmatprep.subr.bf16.mxu0 0
    %584 = vmatpush1.bf16.msra.mxu0 0
    %585 = vmatprep.subr.bf16.mxu0 0
    %586 = vmatpush1.bf16.msra.mxu0 0
    %587 = vmatprep.subr.bf16.mxu0 0
    %588 = vmatpush1.bf16.msra.mxu0 0
    %589 = vmatprep.subr.bf16.mxu0 0
    %590 = vmatpush1.bf16.msra.mxu0 0
    %591 = vmatprep.subr.bf16.mxu0 %v550
    %592 = vmatpush1.bf16.msra.mxu0 %v549
    %593 = vmatprep.subr.bf16.mxu0 %v548
    %594 = vmatpush1.bf16.msra.mxu0 %v547
    %595 = vmatprep.subr.bf16.mxu0 %v546
    %596 = vmatpush1.bf16.msra.mxu0 %v545
    %597 = vmatprep.subr.bf16.mxu0 %v544
    %598 = vmatpush1.bf16.msra.mxu0 %v543
    %599 = vmatprep.subr.bf16.mxu0 0
    %600 = vmatpush2.bf16.msra.mxu0 0
    %601 = vmatprep.subr.bf16.mxu0 0
    %602 = vmatpush2.bf16.msra.mxu0 0
    %603 = vmatprep.subr.bf16.mxu0 0
    %604 = vmatpush2.bf16.msra.mxu0 0
    %605 = vmatprep.subr.bf16.mxu0 0
    %606 = vmatpush2.bf16.msra.mxu0 0
    %607 = vmatprep.subr.bf16.mxu0 0
    %608 = vmatpush2.bf16.msra.mxu0 0
    %609 = vmatprep.subr.bf16.mxu0 0
    %610 = vmatpush2.bf16.msra.mxu0 0
    %611 = vmatprep.subr.bf16.mxu0 0
    %612 = vmatpush2.bf16.msra.mxu0 0
    %613 = vmatprep.subr.bf16.mxu0 0
    %614 = vmatpush2.bf16.msra.mxu0 0
    %615 = vmatprep.mubr.bf16.mxu0 0
    %616 = vmatmul.mubr.bf16.gmra.mxu0 %v560
    %v617 = vpop.f32.mrf.mxu0
    %v618 = vadd.f32 0.0, %v617
    %v619 = vpop.f32.mrf.mxu0
    %v620 = vadd.f32 0.0, %v619
    %v621 = vpop.f32.mrf.mxu0
    %v622 = vadd.f32 0.0, %v621
    %v623 = vpop.f32.mrf.mxu0
    %v624 = vadd.f32 0.0, %v623
    %625 = vmatprep.mubr.bf16.mxu0 0
    %626 = vmatmul.mubr.bf16.gmra.mxu0 %v563
    %v627 = vpop.f32.mrf.mxu0
    %v628 = vadd.f32 0.0, %v627
    %v629 = vpop.f32.mrf.mxu0
    %v630 = vadd.f32 0.0, %v629
    %v631 = vpop.f32.mrf.mxu0
    %v632 = vadd.f32 0.0, %v631
    %v633 = vpop.f32.mrf.mxu0
    %v634 = vadd.f32 0.0, %v633
    %635 = vmatprep.mubr.bf16.mxu0 0
    %636 = vmatmul.mubr.bf16.gmra.mxu0 %v566
    %v637 = vpop.f32.mrf.mxu0
    %v638 = vadd.f32 0.0, %v637
    %v639 = vpop.f32.mrf.mxu0
    %v640 = vadd.f32 0.0, %v639
    %v641 = vpop.f32.mrf.mxu0
    %v642 = vadd.f32 0.0, %v641
    %v643 = vpop.f32.mrf.mxu0
    %v644 = vadd.f32 0.0, %v643
    %645 = vmatprep.mubr.bf16.mxu0 0
    %646 = vmatmul.mubr.bf16.gmra.mxu0 %v569
    %v647 = vpop.f32.mrf.mxu0
    %v648 = vadd.f32 0.0, %v647
    %v649 = vpop.f32.mrf.mxu0
    %v650 = vadd.f32 0.0, %v649
    %v651 = vpop.f32.mrf.mxu0
    %v652 = vadd.f32 0.0, %v651
    %v653 = vpop.f32.mrf.mxu0
    %v654 = vadd.f32 0.0, %v653
    %655 = vmatprep.mubr.bf16.mxu0 0
    %656 = vmatmul.mubr.bf16.gmra.mxu0 %v572
    %v657 = vpop.f32.mrf.mxu0
    %v658 = vadd.f32 0.0, %v657
    %v659 = vpop.f32.mrf.mxu0
    %v660 = vadd.f32 0.0, %v659
    %v661 = vpop.f32.mrf.mxu0
    %v662 = vadd.f32 0.0, %v661
    %v663 = vpop.f32.mrf.mxu0
    %v664 = vadd.f32 0.0, %v663
    %665 = vmatprep.mubr.bf16.mxu0 0
    %666 = vmatmul.mubr.bf16.gmra.mxu0 %v575
    %v667 = vpop.f32.mrf.mxu0
    %v668 = vadd.f32 0.0, %v667
    %v669 = vpop.f32.mrf.mxu0
    %v670 = vadd.f32 0.0, %v669
    %v671 = vpop.f32.mrf.mxu0
    %v672 = vadd.f32 0.0, %v671
    %v673 = vpop.f32.mrf.mxu0
    %v674 = vadd.f32 0.0, %v673
    %675 = vmatprep.mubr.bf16.mxu0 0
    %676 = vmatmul.mubr.bf16.gmra.mxu0 %v578
    %v677 = vpop.f32.mrf.mxu0
    %v678 = vadd.f32 0.0, %v677
    %v679 = vpop.f32.mrf.mxu0
    %v680 = vadd.f32 0.0, %v679
    %v681 = vpop.f32.mrf.mxu0
    %v682 = vadd.f32 0.0, %v681
    %v683 = vpop.f32.mrf.mxu0
    %v684 = vadd.f32 0.0, %v683
    %685 = vmatprep.mubr.bf16.mxu0 0
    %686 = vmatmul.mubr.bf16.gmra.mxu0 %v581
    %v687 = vpop.f32.mrf.mxu0
    %v688 = vadd.f32 0.0, %v687
    %v689 = vpop.f32.mrf.mxu0
    %v690 = vadd.f32 0.0, %v689
    %v691 = vpop.f32.mrf.mxu0
    %v692 = vadd.f32 0.0, %v691
    %v693 = vpop.f32.mrf.mxu0
    %v694 = vadd.f32 0.0, %v693
    %695 = vdwg.mxu0
    %v696 = vadd.f32 %v405, %v618
    %v697 = vadd.f32 %v407, %v620
    %v698 = vadd.f32 %v409, %v622
    %v699 = vadd.f32 %v411, %v624
    %v700 = vadd.f32 %v415, %v628
    %v701 = vadd.f32 %v417, %v630
    %v702 = vadd.f32 %v419, %v632
    %v703 = vadd.f32 %v421, %v634
    %v704 = vadd.f32 %v425, %v638
    %v705 = vadd.f32 %v427, %v640
    %v706 = vadd.f32 %v429, %v642
    %v707 = vadd.f32 %v431, %v644
    %v708 = vadd.f32 %v435, %v648
    %v709 = vadd.f32 %v437, %v650
    %v710 = vadd.f32 %v439, %v652
    %v711 = vadd.f32 %v441, %v654
    %v712 = vadd.f32 %v445, %v658
    %v713 = vadd.f32 %v447, %v660
    %v714 = vadd.f32 %v449, %v662
    %v715 = vadd.f32 %v451, %v664
    %v716 = vadd.f32 %v455, %v668
    %v717 = vadd.f32 %v457, %v670
    %v718 = vadd.f32 %v459, %v672
    %v719 = vadd.f32 %v461, %v674
    %v720 = vadd.f32 %v465, %v678
    %v721 = vadd.f32 %v467, %v680
    %v722 = vadd.f32 %v469, %v682
    %v723 = vadd.f32 %v471, %v684
    %v724 = vadd.f32 %v475, %v688
    %v725 = vadd.f32 %v477, %v690
    %v726 = vadd.f32 %v479, %v692
    %v727 = vadd.f32 %v481, %v694
    %s728 = scalar_lea.vmem %s1, 192
    %v729 = vld [vmem:[%s728] sm:$0xff]
    %v730 = vld [vmem:[%s728 + $0x8] sm:$0xff]
    %v731 = vld [vmem:[%s728 + $0x10] sm:$0xff]
    %v732 = vld [vmem:[%s728 + $0x18] sm:$0xff]
    %v733 = vld [vmem:[%s728 + $0x20] sm:$0xff]
    %v734 = vld [vmem:[%s728 + $0x28] sm:$0xff]
    %v735 = vld [vmem:[%s728 + $0x30] sm:$0xff]
    %v736 = vld [vmem:[%s728 + $0x38] sm:$0xff]
    %vm737 = vsmask.f32 6400
    %v738 = vrot.slane %v69, 1
    %v739 = vrot.slane %v71, 2
    %v740 = vor.u32 %v738, %v739
    %v741 = vrot.slane %v80, 1
    %v742 = vrot.slane %v76, 2
    %v743 = vor.u32 %v741, %v742
    %v744 = vsel %vm737, %v740, %v743
    %v745 = vrot.slane %v88, 1
    %v746 = vrot.slane %v84, 2
    %v747 = vor.u32 %v745, %v746
    %v748 = vsel %vm737, %v743, %v747
    %v749 = vrot.slane %v96, 1
    %v750 = vrot.slane %v92, 2
    %v751 = vor.u32 %v749, %v750
    %v752 = vsel %vm737, %v747, %v751
    %v753 = vrot.slane %v104, 1
    %v754 = vrot.slane %v100, 2
    %v755 = vor.u32 %v753, %v754
    %v756 = vsel %vm737, %v751, %v755
    %v757 = vrot.slane %v112, 1
    %v758 = vrot.slane %v108, 2
    %v759 = vor.u32 %v757, %v758
    %v760 = vsel %vm737, %v755, %v759
    %v761 = vrot.slane %v120, 1
    %v762 = vrot.slane %v116, 2
    %v763 = vor.u32 %v761, %v762
    %v764 = vsel %vm737, %v759, %v763
    %v765 = vrot.slane %v128, 1
    %v766 = vrot.slane %v124, 2
    %v767 = vor.u32 %v765, %v766
    %v768 = vsel %vm737, %v763, %v767
    %v769 = vshrl.u32 %v57, 16
    %v771 = vrot.slane %v769, 1
    %v772 = vrot.slane %v132, 2
    %v773 = vor.u32 %v771, %v772
    %v774 = vsel %vm737, %v767, %v773
    %v783 = vunpack.c.l.b16 %v729
    %v784 = vunpack.c.h.b16 %v729
    %v785 = vunpack.c.l.b16 %v730
    %v786 = vunpack.c.h.b16 %v730
    %v787 = vunpack.c.l.b16 %v731
    %v788 = vunpack.c.h.b16 %v731
    %v789 = vunpack.c.l.b16 %v732
    %v790 = vunpack.c.h.b16 %v732
    %v791 = vunpack.c.l.b16 %v733
    %v792 = vunpack.c.h.b16 %v733
    %v793 = vunpack.c.l.b16 %v734
    %v794 = vunpack.c.h.b16 %v734
    %v795 = vunpack.c.l.b16 %v735
    %v796 = vunpack.c.h.b16 %v735
    %v797 = vunpack.c.l.b16 %v736
    %v798 = vunpack.c.h.b16 %v736
    %v799 = vpack.c.b16 %v785, %v783
    %v800 = vpack.c.b16 %v786, %v784
    %v801 = vpack.c.b16 %v789, %v787
    %v802 = vpack.c.b16 %v790, %v788
    %v803 = vpack.c.b16 %v793, %v791
    %v804 = vpack.c.b16 %v794, %v792
    %v805 = vpack.c.b16 %v797, %v795
    %v806 = vpack.c.b16 %v798, %v796
    %v816 = vsel %vm176, %v744, 0
    %v819 = vsel %vm176, %v748, 0
    %v822 = vsel %vm176, %v752, 0
    %v825 = vsel %vm176, %v756, 0
    %v828 = vsel %vm176, %v760, 0
    %v831 = vsel %vm176, %v764, 0
    %v834 = vsel %vm176, %v768, 0
    %v837 = vsel %vm176, %v774, 0
    %839 = vmatprep.subr.bf16.mxu0 0
    %840 = vmatpush1.bf16.msra.mxu0 0
    %841 = vmatprep.subr.bf16.mxu0 0
    %842 = vmatpush1.bf16.msra.mxu0 0
    %843 = vmatprep.subr.bf16.mxu0 0
    %844 = vmatpush1.bf16.msra.mxu0 0
    %845 = vmatprep.subr.bf16.mxu0 0
    %846 = vmatpush1.bf16.msra.mxu0 0
    %847 = vmatprep.subr.bf16.mxu0 %v806
    %848 = vmatpush1.bf16.msra.mxu0 %v805
    %849 = vmatprep.subr.bf16.mxu0 %v804
    %850 = vmatpush1.bf16.msra.mxu0 %v803
    %851 = vmatprep.subr.bf16.mxu0 %v802
    %852 = vmatpush1.bf16.msra.mxu0 %v801
    %853 = vmatprep.subr.bf16.mxu0 %v800
    %854 = vmatpush1.bf16.msra.mxu0 %v799
    %855 = vmatprep.subr.bf16.mxu0 0
    %856 = vmatpush2.bf16.msra.mxu0 0
    %857 = vmatprep.subr.bf16.mxu0 0
    %858 = vmatpush2.bf16.msra.mxu0 0
    %859 = vmatprep.subr.bf16.mxu0 0
    %860 = vmatpush2.bf16.msra.mxu0 0
    %861 = vmatprep.subr.bf16.mxu0 0
    %862 = vmatpush2.bf16.msra.mxu0 0
    %863 = vmatprep.subr.bf16.mxu0 0
    %864 = vmatpush2.bf16.msra.mxu0 0
    %865 = vmatprep.subr.bf16.mxu0 0
    %866 = vmatpush2.bf16.msra.mxu0 0
    %867 = vmatprep.subr.bf16.mxu0 0
    %868 = vmatpush2.bf16.msra.mxu0 0
    %869 = vmatprep.subr.bf16.mxu0 0
    %870 = vmatpush2.bf16.msra.mxu0 0
    %871 = vmatprep.mubr.bf16.mxu0 0
    %872 = vmatmul.mubr.bf16.gmra.mxu0 %v816
    %v873 = vpop.f32.mrf.mxu0
    %v874 = vadd.f32 0.0, %v873
    %v875 = vpop.f32.mrf.mxu0
    %v876 = vadd.f32 0.0, %v875
    %v877 = vpop.f32.mrf.mxu0
    %v878 = vadd.f32 0.0, %v877
    %v879 = vpop.f32.mrf.mxu0
    %v880 = vadd.f32 0.0, %v879
    %881 = vmatprep.mubr.bf16.mxu0 0
    %882 = vmatmul.mubr.bf16.gmra.mxu0 %v819
    %v883 = vpop.f32.mrf.mxu0
    %v884 = vadd.f32 0.0, %v883
    %v885 = vpop.f32.mrf.mxu0
    %v886 = vadd.f32 0.0, %v885
    %v887 = vpop.f32.mrf.mxu0
    %v888 = vadd.f32 0.0, %v887
    %v889 = vpop.f32.mrf.mxu0
    %v890 = vadd.f32 0.0, %v889
    %891 = vmatprep.mubr.bf16.mxu0 0
    %892 = vmatmul.mubr.bf16.gmra.mxu0 %v822
    %v893 = vpop.f32.mrf.mxu0
    %v894 = vadd.f32 0.0, %v893
    %v895 = vpop.f32.mrf.mxu0
    %v896 = vadd.f32 0.0, %v895
    %v897 = vpop.f32.mrf.mxu0
    %v898 = vadd.f32 0.0, %v897
    %v899 = vpop.f32.mrf.mxu0
    %v900 = vadd.f32 0.0, %v899
    %901 = vmatprep.mubr.bf16.mxu0 0
    %902 = vmatmul.mubr.bf16.gmra.mxu0 %v825
    %v903 = vpop.f32.mrf.mxu0
    %v904 = vadd.f32 0.0, %v903
    %v905 = vpop.f32.mrf.mxu0
    %v906 = vadd.f32 0.0, %v905
    %v907 = vpop.f32.mrf.mxu0
    %v908 = vadd.f32 0.0, %v907
    %v909 = vpop.f32.mrf.mxu0
    %v910 = vadd.f32 0.0, %v909
    %911 = vmatprep.mubr.bf16.mxu0 0
    %912 = vmatmul.mubr.bf16.gmra.mxu0 %v828
    %v913 = vpop.f32.mrf.mxu0
    %v914 = vadd.f32 0.0, %v913
    %v915 = vpop.f32.mrf.mxu0
    %v916 = vadd.f32 0.0, %v915
    %v917 = vpop.f32.mrf.mxu0
    %v918 = vadd.f32 0.0, %v917
    %v919 = vpop.f32.mrf.mxu0
    %v920 = vadd.f32 0.0, %v919
    %921 = vmatprep.mubr.bf16.mxu0 0
    %922 = vmatmul.mubr.bf16.gmra.mxu0 %v831
    %v923 = vpop.f32.mrf.mxu0
    %v924 = vadd.f32 0.0, %v923
    %v925 = vpop.f32.mrf.mxu0
    %v926 = vadd.f32 0.0, %v925
    %v927 = vpop.f32.mrf.mxu0
    %v928 = vadd.f32 0.0, %v927
    %v929 = vpop.f32.mrf.mxu0
    %v930 = vadd.f32 0.0, %v929
    %931 = vmatprep.mubr.bf16.mxu0 0
    %932 = vmatmul.mubr.bf16.gmra.mxu0 %v834
    %v933 = vpop.f32.mrf.mxu0
    %v934 = vadd.f32 0.0, %v933
    %v935 = vpop.f32.mrf.mxu0
    %v936 = vadd.f32 0.0, %v935
    %v937 = vpop.f32.mrf.mxu0
    %v938 = vadd.f32 0.0, %v937
    %v939 = vpop.f32.mrf.mxu0
    %v940 = vadd.f32 0.0, %v939
    %941 = vmatprep.mubr.bf16.mxu0 0
    %942 = vmatmul.mubr.bf16.gmra.mxu0 %v837
    %v943 = vpop.f32.mrf.mxu0
    %v944 = vadd.f32 0.0, %v943
    %v945 = vpop.f32.mrf.mxu0
    %v946 = vadd.f32 0.0, %v945
    %v947 = vpop.f32.mrf.mxu0
    %v948 = vadd.f32 0.0, %v947
    %v949 = vpop.f32.mrf.mxu0
    %v950 = vadd.f32 0.0, %v949
    %951 = vdwg.mxu0
    %v952 = vadd.f32 %v696, %v874
    %v953 = vadd.f32 %v697, %v876
    %v954 = vadd.f32 %v698, %v878
    %v955 = vadd.f32 %v699, %v880
    %v956 = vadd.f32 %v700, %v884
    %v957 = vadd.f32 %v701, %v886
    %v958 = vadd.f32 %v702, %v888
    %v959 = vadd.f32 %v703, %v890
    %v960 = vadd.f32 %v704, %v894
    %v961 = vadd.f32 %v705, %v896
    %v962 = vadd.f32 %v706, %v898
    %v963 = vadd.f32 %v707, %v900
    %v964 = vadd.f32 %v708, %v904
    %v965 = vadd.f32 %v709, %v906
    %v966 = vadd.f32 %v710, %v908
    %v967 = vadd.f32 %v711, %v910
    %v968 = vadd.f32 %v712, %v914
    %v969 = vadd.f32 %v713, %v916
    %v970 = vadd.f32 %v714, %v918
    %v971 = vadd.f32 %v715, %v920
    %v972 = vadd.f32 %v716, %v924
    %v973 = vadd.f32 %v717, %v926
    %v974 = vadd.f32 %v718, %v928
    %v975 = vadd.f32 %v719, %v930
    %v976 = vadd.f32 %v720, %v934
    %v977 = vadd.f32 %v721, %v936
    %v978 = vadd.f32 %v722, %v938
    %v979 = vadd.f32 %v723, %v940
    %v980 = vadd.f32 %v724, %v944
    %v981 = vadd.f32 %v725, %v946
    %v982 = vadd.f32 %v726, %v948
    %v983 = vadd.f32 %v727, %v950
    %984 = vxpose.xlu0.b32.start [1/16] %v952, 128
    %985 = vxpose.xlu0.b32.cont [2/16] %v954, 128
    %986 = vxpose.xlu0.b32.cont [3/16] %v956, 128
    %987 = vxpose.xlu0.b32.cont [4/16] %v958, 128
    %988 = vxpose.xlu0.b32.cont [5/16] %v960, 128
    %989 = vxpose.xlu0.b32.cont [6/16] %v962, 128
    %990 = vxpose.xlu0.b32.cont [7/16] %v964, 128
    %991 = vxpose.xlu0.b32.cont [8/16] %v966, 128
    %992 = vxpose.xlu0.b32.cont [9/16] %v968, 128
    %993 = vxpose.xlu0.b32.cont [10/16] %v970, 128
    %994 = vxpose.xlu0.b32.cont [11/16] %v972, 128
    %995 = vxpose.xlu0.b32.cont [12/16] %v974, 128
    %996 = vxpose.xlu0.b32.cont [13/16] %v976, 128
    %997 = vxpose.xlu0.b32.cont [14/16] %v978, 128
    %998 = vxpose.xlu0.b32.cont [15/16] %v980, 128
    %999 = vxpose.xlu0.b32.end [16/16] %v982, 128
    %v1000 = vpop.trf.xlu0
    %v1001 = vpop.trf.xlu0
    %v1002 = vpop.trf.xlu0
    %v1003 = vpop.trf.xlu0
    %v1004 = vpop.trf.xlu0
    %v1005 = vpop.trf.xlu0
    %v1006 = vpop.trf.xlu0
    %v1007 = vpop.trf.xlu0
    %v1008 = vpop.trf.xlu0
    %v1009 = vpop.trf.xlu0
    %v1010 = vpop.trf.xlu0
    %v1011 = vpop.trf.xlu0
    %v1012 = vpop.trf.xlu0
    %v1013 = vpop.trf.xlu0
    %v1014 = vpop.trf.xlu0
    %v1015 = vpop.trf.xlu0
    %1016 = vxpose.xlu0.b32.start [1/16] %v953, 128
    %1017 = vxpose.xlu0.b32.cont [2/16] %v955, 128
    %1018 = vxpose.xlu0.b32.cont [3/16] %v957, 128
    %1019 = vxpose.xlu0.b32.cont [4/16] %v959, 128
    %1020 = vxpose.xlu0.b32.cont [5/16] %v961, 128
    %1021 = vxpose.xlu0.b32.cont [6/16] %v963, 128
    %1022 = vxpose.xlu0.b32.cont [7/16] %v965, 128
    %1023 = vxpose.xlu0.b32.cont [8/16] %v967, 128
    %1024 = vxpose.xlu0.b32.cont [9/16] %v969, 128
    %1025 = vxpose.xlu0.b32.cont [10/16] %v971, 128
    %1026 = vxpose.xlu0.b32.cont [11/16] %v973, 128
    %1027 = vxpose.xlu0.b32.cont [12/16] %v975, 128
    %1028 = vxpose.xlu0.b32.cont [13/16] %v977, 128
    %1029 = vxpose.xlu0.b32.cont [14/16] %v979, 128
    %1030 = vxpose.xlu0.b32.cont [15/16] %v981, 128
    %1031 = vxpose.xlu0.b32.end [16/16] %v983, 128
    %v1032 = vpop.trf.xlu0
    %v1033 = vpop.trf.xlu0
    %v1034 = vpop.trf.xlu0
    %v1035 = vpop.trf.xlu0
    %v1036 = vpop.trf.xlu0
    %v1037 = vpop.trf.xlu0
    %v1038 = vpop.trf.xlu0
    %v1039 = vpop.trf.xlu0
    %v1040 = vpop.trf.xlu0
    %v1041 = vpop.trf.xlu0
    %v1042 = vpop.trf.xlu0
    %v1043 = vpop.trf.xlu0
    %v1044 = vpop.trf.xlu0
    %v1045 = vpop.trf.xlu0
    %v1046 = vpop.trf.xlu0
    %v1047 = vpop.trf.xlu0
    %v1048 = vmul.f32 %v1000, %v1000
    %v1049 = vmul.f32 %v1001, %v1001
    %v1050 = vmul.f32 %v1002, %v1002
    %v1051 = vmul.f32 %v1003, %v1003
    %v1052 = vmul.f32 %v1004, %v1004
    %v1053 = vmul.f32 %v1005, %v1005
    %v1054 = vmul.f32 %v1006, %v1006
    %v1055 = vmul.f32 %v1007, %v1007
    %v1056 = vmul.f32 %v1008, %v1008
    %v1057 = vmul.f32 %v1009, %v1009
    %v1058 = vmul.f32 %v1010, %v1010
    %v1059 = vmul.f32 %v1011, %v1011
    %v1060 = vmul.f32 %v1012, %v1012
    %v1061 = vmul.f32 %v1013, %v1013
    %v1062 = vmul.f32 %v1014, %v1014
    %v1063 = vmul.f32 %v1015, %v1015
    %v1064 = vmul.f32 %v1032, %v1032
    %v1065 = vmul.f32 %v1033, %v1033
    %v1066 = vmul.f32 %v1034, %v1034
    %v1067 = vmul.f32 %v1035, %v1035
    %v1068 = vmul.f32 %v1036, %v1036
    %v1069 = vmul.f32 %v1037, %v1037
    %v1070 = vmul.f32 %v1038, %v1038
    %v1071 = vmul.f32 %v1039, %v1039
    %v1072 = vmul.f32 %v1040, %v1040
    %v1073 = vmul.f32 %v1041, %v1041
    %v1074 = vmul.f32 %v1042, %v1042
    %v1075 = vmul.f32 %v1043, %v1043
    %v1076 = vmul.f32 %v1044, %v1044
    %v1077 = vmul.f32 %v1045, %v1045
    %v1078 = vmul.f32 %v1046, %v1046
    %v1079 = vmul.f32 %v1047, %v1047
    %v1080 = vlaneseq
    %v1081 = vshrl.u32 %v1080, 7
    %v1082 = vadd.s32 %v1081, 8
    %v1083 = vadd.s32 %v1081, 16
    %v1084 = vadd.s32 %v1081, 24
    %v1085 = vadd.s32 %v1081, 32
    %v1086 = vadd.s32 %v1081, 40
    %v1087 = vadd.s32 %v1081, 48
    %v1088 = vadd.s32 %v1081, 56
    %v1089 = vadd.s32 %v1081, 64
    %v1090 = vadd.s32 %v1081, 72
    %v1091 = vadd.s32 %v1081, 80
    %v1092 = vadd.s32 %v1081, 88
    %v1093 = vadd.s32 %v1081, 96
    %v1094 = vadd.s32 %v1081, 104
    %v1095 = vadd.s32 %v1081, 112
    %v1096 = vadd.s32 %v1081, 120
    %vm1097 = vcmp.eq.s32.totalorder %v1081, 0
    %vm1098 = vcmp.eq.s32.totalorder %v1082, 0
    %vm1099 = vcmp.eq.s32.totalorder %v1083, 0
    %vm1100 = vcmp.eq.s32.totalorder %v1084, 0
    %vm1101 = vcmp.eq.s32.totalorder %v1085, 0
    %vm1102 = vcmp.eq.s32.totalorder %v1086, 0
    %vm1103 = vcmp.eq.s32.totalorder %v1087, 0
    %vm1104 = vcmp.eq.s32.totalorder %v1088, 0
    %vm1105 = vcmp.eq.s32.totalorder %v1089, 0
    %vm1106 = vcmp.eq.s32.totalorder %v1090, 0
    %vm1107 = vcmp.eq.s32.totalorder %v1091, 0
    %vm1108 = vcmp.eq.s32.totalorder %v1092, 0
    %vm1109 = vcmp.eq.s32.totalorder %v1093, 0
    %vm1110 = vcmp.eq.s32.totalorder %v1094, 0
    %vm1111 = vcmp.eq.s32.totalorder %v1095, 0
    %vm1112 = vcmp.eq.s32.totalorder %v1096, 0
    %v1113 = vsel %vm1097, 0.0, %v1064
    %v1114 = vsel %vm1098, 0.0, %v1065
    %v1115 = vsel %vm1099, 0.0, %v1066
    %v1116 = vsel %vm1100, 0.0, %v1067
    %v1117 = vsel %vm1101, 0.0, %v1068
    %v1118 = vsel %vm1102, 0.0, %v1069
    %v1119 = vsel %vm1103, 0.0, %v1070
    %v1120 = vsel %vm1104, 0.0, %v1071
    %v1121 = vsel %vm1105, 0.0, %v1072
    %v1122 = vsel %vm1106, 0.0, %v1073
    %v1123 = vsel %vm1107, 0.0, %v1074
    %v1124 = vsel %vm1108, 0.0, %v1075
    %v1125 = vsel %vm1109, 0.0, %v1076
    %v1126 = vsel %vm1110, 0.0, %v1077
    %v1127 = vsel %vm1111, 0.0, %v1078
    %v1128 = vsel %vm1112, 0.0, %v1079
    %v1129 = vadd.f32 %v1048, %v1113
    %v1130 = vadd.f32 %v1049, %v1114
    %v1131 = vadd.f32 %v1050, %v1115
    %v1132 = vadd.f32 %v1051, %v1116
    %v1133 = vadd.f32 %v1052, %v1117
    %v1134 = vadd.f32 %v1053, %v1118
    %v1135 = vadd.f32 %v1054, %v1119
    %v1136 = vadd.f32 %v1055, %v1120
    %v1137 = vadd.f32 %v1056, %v1121
    %v1138 = vadd.f32 %v1057, %v1122
    %v1139 = vadd.f32 %v1058, %v1123
    %v1140 = vadd.f32 %v1059, %v1124
    %v1141 = vadd.f32 %v1060, %v1125
    %v1142 = vadd.f32 %v1061, %v1126
    %v1143 = vadd.f32 %v1062, %v1127
    %v1144 = vadd.f32 %v1063, %v1128
    %1145 = vst [vmem:[#allocation2] sm:$0xff] %v1129
    %1146 = vst [vmem:[#allocation2 + $0x8] sm:$0xff] %v1130
    %1147 = vst [vmem:[#allocation2 + $0x10] sm:$0xff] %v1131
    %1148 = vst [vmem:[#allocation2 + $0x18] sm:$0xff] %v1132
    %1149 = vst [vmem:[#allocation2 + $0x20] sm:$0xff] %v1133
    %1150 = vst [vmem:[#allocation2 + $0x28] sm:$0xff] %v1134
    %1151 = vst [vmem:[#allocation2 + $0x30] sm:$0xff] %v1135
    %1152 = vst [vmem:[#allocation2 + $0x38] sm:$0xff] %v1136
    %1153 = vst [vmem:[#allocation2 + $0x40] sm:$0xff] %v1137
    %1154 = vst [vmem:[#allocation2 + $0x48] sm:$0xff] %v1138
    %1155 = vst [vmem:[#allocation2 + $0x50] sm:$0xff] %v1139
    %1156 = vst [vmem:[#allocation2 + $0x58] sm:$0xff] %v1140
    %1157 = vst [vmem:[#allocation2 + $0x60] sm:$0xff] %v1141
    %1158 = vst [vmem:[#allocation2 + $0x68] sm:$0xff] %v1142
    %1159 = vst [vmem:[#allocation2 + $0x70] sm:$0xff] %v1143
    %1160 = vst [vmem:[#allocation2 + $0x78] sm:$0xff] %v1144
    %1161 = vst [vmem:[#allocation2 + $0x80] sm:$0x1] %v1064
    %v1162 = vld [vmem:[%s2] sm:$0xff]
    %v1163 = vld [vmem:[%s2 + $0x8] sm:$0xff]
    %v1164 = vld [vmem:[%s2 + $0x10] sm:$0xff]
    %v1165 = vld [vmem:[%s2 + $0x18] sm:$0xff]
    %v1166 = vld [vmem:[%s3] sm:$0xff]
    %v1167 = vld [vmem:[%s3 + $0x8] sm:$0xff]
    %v1168 = vld [vmem:[%s3 + $0x10] sm:$0xff]
    %v1169 = vld [vmem:[%s3 + $0x18] sm:$0xff]
    %1171 = vset.pattern.permute.xlu0 0
    %1172 = vperm.xlu0 %1171, %v1166
    %v1173 = vpop.permute.xlu0 %1172
    %1176 = vset.pattern.permute.xlu0 0
    %1177 = vperm.xlu0 %1176, %v1167
    %v1178 = vpop.permute.xlu0 %1177
    %1181 = vset.pattern.permute.xlu0 0
    %1182 = vperm.xlu0 %1181, %v1168
    %v1183 = vpop.permute.xlu0 %1182
    %1186 = vset.pattern.permute.xlu0 0
    %1187 = vperm.xlu0 %1186, %v1169
    %v1188 = vpop.permute.xlu0 %1187
    %v1190 = vlaneseq
    %v1191 = vshrl.u32 %v1190, 7
    %v1192 = vsub.s32 0, %v1191
    %v1193 = vrot.slane %v1064, %v1192
    %v1194 = vmul.f32 %v1173, %v1193
    %v1195 = vmul.f32 %v1178, %v1193
    %v1196 = vmul.f32 %v1183, %v1193
    %v1197 = vmul.f32 %v1188, %v1193
    %1198 = vmatprep.subr.mxu0 0.0
    %1199 = vmatpush1.msra.mxu0 %v1144
    %1200 = vmatprep.subr.mxu0 0.0
    %1201 = vmatpush1.msra.mxu0 %v1143
    %1202 = vmatprep.subr.mxu0 0.0
    %1203 = vmatpush1.msra.mxu0 %v1142
    %1204 = vmatprep.subr.mxu0 0.0
    %1205 = vmatpush1.msra.mxu0 %v1141
    %1206 = vmatprep.subr.mxu0 0.0
    %1207 = vmatpush1.msra.mxu0 %v1140
    %1208 = vmatprep.subr.mxu0 0.0
    %1209 = vmatpush1.msra.mxu0 %v1139
    %1210 = vmatprep.subr.mxu0 0.0
    %1211 = vmatpush1.msra.mxu0 %v1138
    %1212 = vmatprep.subr.mxu0 0.0
    %1213 = vmatpush1.msra.mxu0 %v1137
    %1214 = vmatprep.subr.mxu0 0.0
    %1215 = vmatpush1.msra.mxu0 %v1136
    %1216 = vmatprep.subr.mxu0 0.0
    %1217 = vmatpush1.msra.mxu0 %v1135
    %1218 = vmatprep.subr.mxu0 0.0
    %1219 = vmatpush1.msra.mxu0 %v1134
    %1220 = vmatprep.subr.mxu0 0.0
    %1221 = vmatpush1.msra.mxu0 %v1133
    %1222 = vmatprep.subr.mxu0 0.0
    %1223 = vmatpush1.msra.mxu0 %v1132
    %1224 = vmatprep.subr.mxu0 0.0
    %1225 = vmatpush1.msra.mxu0 %v1131
    %1226 = vmatprep.subr.mxu0 0.0
    %1227 = vmatpush1.msra.mxu0 %v1130
    %1228 = vmatprep.subr.mxu0 0.0
    %1229 = vmatpush1.msra.mxu0 %v1129
    %1230 = vmatprep.subr.mxu0 0.0
    %1231 = vmatpush2.msra.mxu0 0.0
    %1232 = vmatprep.subr.mxu0 0.0
    %1233 = vmatpush2.msra.mxu0 0.0
    %1234 = vmatprep.subr.mxu0 0.0
    %1235 = vmatpush2.msra.mxu0 0.0
    %1236 = vmatprep.subr.mxu0 0.0
    %1237 = vmatpush2.msra.mxu0 0.0
    %1238 = vmatprep.subr.mxu0 0.0
    %1239 = vmatpush2.msra.mxu0 0.0
    %1240 = vmatprep.subr.mxu0 0.0
    %1241 = vmatpush2.msra.mxu0 0.0
    %1242 = vmatprep.subr.mxu0 0.0
    %1243 = vmatpush2.msra.mxu0 0.0
    %1244 = vmatprep.subr.mxu0 0.0
    %1245 = vmatpush2.msra.mxu0 0.0
    %1246 = vmatprep.subr.mxu0 0.0
    %1247 = vmatpush2.msra.mxu0 0.0
    %1248 = vmatprep.subr.mxu0 0.0
    %1249 = vmatpush2.msra.mxu0 0.0
    %1250 = vmatprep.subr.mxu0 0.0
    %1251 = vmatpush2.msra.mxu0 0.0
    %1252 = vmatprep.subr.mxu0 0.0
    %1253 = vmatpush2.msra.mxu0 0.0
    %1254 = vmatprep.subr.mxu0 0.0
    %1255 = vmatpush2.msra.mxu0 0.0
    %1256 = vmatprep.subr.mxu0 0.0
    %1257 = vmatpush2.msra.mxu0 0.0
    %1258 = vmatprep.subr.mxu0 0.0
    %1259 = vmatpush2.msra.mxu0 0.0
    %1260 = vmatprep.subr.mxu0 0.0
    %1261 = vmatpush2.msra.mxu0 0.0
    %1262 = vmatprep.mubr.f32.mxu0 0.0
    %1263 = vmatmul.mubr.f32.gmra.mxu0 %v1162
    %v1264 = vpop.f32.mrf.mxu0
    %v1265 = vadd.f32 %v1194, %v1264
    %v1266 = vpop.f32.mrf.mxu0
    %1267 = vmatprep.mubr.f32.mxu0 0.0
    %1268 = vmatmul.mubr.f32.gmra.mxu0 %v1163
    %v1269 = vpop.f32.mrf.mxu0
    %v1270 = vadd.f32 %v1195, %v1269
    %v1271 = vpop.f32.mrf.mxu0
    %1272 = vmatprep.mubr.f32.mxu0 0.0
    %1273 = vmatmul.mubr.f32.gmra.mxu0 %v1164
    %v1274 = vpop.f32.mrf.mxu0
    %v1275 = vadd.f32 %v1196, %v1274
    %v1276 = vpop.f32.mrf.mxu0
    %1277 = vmatprep.mubr.f32.mxu0 0.0
    %1278 = vmatmul.mubr.f32.gmra.mxu0 %v1165
    %v1279 = vpop.f32.mrf.mxu0
    %v1280 = vadd.f32 %v1197, %v1279
    %v1281 = vpop.f32.mrf.mxu0
    %1282 = vdwg.mxu0
    %1283 = vst [vmem:[#allocation4] sm:$0xff] %v1265
    %1284 = vst [vmem:[#allocation4 + $0x8] sm:$0xff] %v1270
    %1285 = vst [vmem:[#allocation4 + $0x10] sm:$0xff] %v1275
    %1286 = vst [vmem:[#allocation4 + $0x18] sm:$0xff] %v1280
    // Predicated region
    $region18: #{_tfc_forward.1} parent=1 // pred_check
      _
    $region19: #{_tfc_forward.1} parent=1 // pred_check_branch
      %1288 = sbr.rel (0) target = $region21
    $region20: #{_tfc_forward.1} parent=1 // pred_region
      %s1290 = ssub.s32 2176, 2176
      %1291 = vsyncadd [#allocation3], %s1290
      %s1292 = sshll.u32 [#allocation2], 4
      %s1293 = int_to_ptr.vmem [resolvable:$true] %s1292
      %1298 = dma.vmem_to_hbm [thread:$0]  %s1293, 2176, %s4, [#allocation3], 128, 128, 8
    $region21: #{_tfc_forward.1} parent=1 // pred_fallthru
      _
    // Predicated region
    $region22: #{_tfc_forward.1} parent=1 // pred_check
      _
    $region23: #{_tfc_forward.1} parent=1 // pred_check_branch
      %1300 = sbr.rel (0) target = $region25
    $region24: #{_tfc_forward.1} parent=1 // pred_region
      %s1302 = ssub.s32 512, 512
      %1303 = vsyncadd [#allocation5], %s1302
      %s1304 = sshll.u32 [#allocation4], 4
      %s1305 = int_to_ptr.vmem [resolvable:$true] %s1304
      %1310 = dma.vmem_to_hbm [thread:$0]  %s1305, 512, %s5, [#allocation5], 128, 128, 8
    $region25: #{_tfc_forward.1} parent=1 // pred_fallthru
      _
    // Predicated region
    $region26: #{_tfc_forward.1} parent=1 // pred_check
      _
    $region27: #{_tfc_forward.1} parent=1 // pred_check_branch
      %1312 = sbr.rel (0) target = $region29
    $region28: #{_tfc_forward.1} parent=1 // pred_region
      %1313 = dma.done [#allocation3], 2176
    $region29: #{_tfc_forward.1} parent=1 // pred_fallthru
      _
    // Predicated region
    $region30: #{_tfc_forward.1} parent=1 // pred_check
      _
    $region31: #{_tfc_forward.1} parent=1 // pred_check_branch
      %1315 = sbr.rel (0) target = $region33
    $region32: #{_tfc_forward.1} parent=1 // pred_region
      %1316 = dma.done [#allocation5], 512
    $region33: #{_tfc_forward.1} parent=1 // pred_fallthru
      _
    %1317 = vsyncpa [#allocation3], 1
    %1318 = vsyncpa [#allocation5], 1

</llo_original>
